<compile_context>
chip_gen: v5e
topology: v5e:2x2
jax: 0.10.0
libtpu: 0.0.40
codegen_flags: <defaults>
</compile_context>

<pallas_src>
import functools

import numpy as np
import jax
import jax.numpy as jnp
from jax.experimental import pallas as pl
from jax.experimental.pallas import tpu as pltpu

LOG_2PI = float(np.log(2.0 * np.pi))

# Per z block budget (Pallas double-buffers it).  ~8 MiB hits the measured
# HBM-roofline plateau on v5e/v6e/v7x once vmem_limit_bytes is raised.
DEFAULT_BLOCK_BUDGET_BYTES = 8 * 1024 * 1024


# ----------------------------- kernels --------------------------------------

def _sum_sq_single_kernel(z_ref, out_ref):
    # Whole feature dim in one block: no accumulator, no phases, no masking
    # (the block equals the full array extent on both axes that matter).
    z = z_ref[...].astype(jnp.float32)
    out_ref[...] = jnp.sum(z * z, axis=-1, keepdims=True)


def _sum_sq_tiled_kernel(z_ref, out_ref, *, td, d_total, ragged):
    # out_ref (f32) is the accumulator: its block index is constant along the
    # reduction axis j (last grid axis), so it stays resident in VMEM.
    j = pl.program_id(1)

    @pl.when(j == 0)
    def _():
        out_ref[...] = jnp.zeros_like(out_ref)

    z = z_ref[...].astype(jnp.float32)
    zz = z * z
    if ragged:
        # Last feature tile overhangs D: zero the out-of-bounds lanes (their
        # VMEM contents are unspecified).  Static no-op when D % TD == 0.
        lane = jax.lax.broadcasted_iota(jnp.int32, zz.shape, 1)
        zz = jnp.where(j * td + lane < d_total, zz, 0.0)
    out_ref[...] += jnp.sum(zz, axis=-1, keepdims=True)


# ----------------------------- wrapper ---------------------------------------

def _batch_tile(batch: int, cap: int = 512) -> int:
    """Sublane-axis tile: a multiple of 8 dividing B (<= cap), else full B."""
    if batch % 8 != 0:
        return batch  # full batch block is always a legal block shape
    best = 8
    for t in range(8, min(batch, cap) + 1, 8):
        if batch % t == 0:
            best = t
    return best


def real_nvp_loss(z, sldj, k: int = 256, *,
                  block_budget_bytes: int = DEFAULT_BLOCK_BUDGET_BYTES):
    """NLL loss of a RealNVP model. z: (B, C, H, W) (any float dtype), sldj: (B,)."""
    B = z.shape[0]
    D = int(np.prod(z.shape[1:]))

    # Native dtype for the HBM stream (bf16 inputs halve bytes read);
    # the kernel casts to f32 before squaring.
    z_flat = z.reshape(B, D)
    elem_bytes = jnp.dtype(z_flat.dtype).itemsize

    BB = _batch_tile(B)
    n_b = B // BB  # exact by construction (BB divides B or BB == B)

    # Feature tile: largest multiple of 128 under the block budget (no
    # divisibility requirement on D; ragged tail is masked in-kernel).
    max_td = max(128, (block_budget_bytes // max(1, BB * elem_bytes)) // 128 * 128)

    def _compiler_params(sem, block_bytes):
        vmem_limit = max(16 * 1024 * 1024,
                         min(32 * 1024 * 1024, 2 * block_bytes + 4 * 1024 * 1024))
        return pltpu.CompilerParams(dimension_semantics=sem,
                                    vmem_limit_bytes=vmem_limit)

    if D <= max_td:
        # Everything fits one feature block: phase-free kernel.
        block_bytes = BB * D * elem_bytes
        sum_zz = pl.pallas_call(
            _sum_sq_single_kernel,
            out_shape=jax.ShapeDtypeStruct((B, 1), jnp.float32),
            grid_spec=pltpu.PrefetchScalarGridSpec(
                num_scalar_prefetch=0,
                grid=(n_b,),
                in_specs=[pl.BlockSpec((BB, D), lambda i: (i, 0))],
                out_specs=pl.BlockSpec((BB, 1), lambda i: (i, 0)),
            ),
            compiler_params=_compiler_params(("parallel",), block_bytes),
        )(z_flat)
    else:
        TD = max_td
        n_d = pl.cdiv(D, TD)
        ragged = (D % TD) != 0
        block_bytes = BB * TD * elem_bytes
        kernel = functools.partial(_sum_sq_tiled_kernel,
                                   td=TD, d_total=D, ragged=ragged)
        sum_zz = pl.pallas_call(
            kernel,
            out_shape=jax.ShapeDtypeStruct((B, 1), jnp.float32),
            grid_spec=pltpu.PrefetchScalarGridSpec(
                num_scalar_prefetch=0,
                grid=(n_b, n_d),
                in_specs=[pl.BlockSpec((BB, TD), lambda i, j: (i, j))],
                out_specs=pl.BlockSpec((BB, 1), lambda i, j: (i, 0)),
            ),
            compiler_params=_compiler_params(("parallel", "arbitrary"), block_bytes),
        )(z_flat)

    # O(B) finalize in plain JAX (keeps the batch grid axis "parallel" and
    # improves rounding): fold constants once, add sldj, take -mean.
    sum_zz = sum_zz.reshape(B)
    prior_ll = -0.5 * sum_zz - (float(np.log(k)) + 0.5 * LOG_2PI) * float(D)
    ll = prior_ll + sldj.reshape(B).astype(jnp.float32)
    return -jnp.mean(ll)


def real_nvp_loss_ref(z, sldj, k: int = 256):
    """Plain-JAX reference mirroring the PyTorch module."""
    B = z.shape[0]
    prior_ll = -0.5 * (z.astype(jnp.float32) ** 2 + LOG_2PI)
    prior_ll = prior_ll.reshape(B, -1).sum(-1) - np.log(k) * np.prod(z.shape[1:])
    ll = prior_ll + sldj.astype(jnp.float32)
    return -ll.mean()


if __name__ == "__main__":
    key = jax.random.PRNGKey(0)
    kz, ks, kz2, ks2, kz3, ks3, kz4, ks4 = jax.random.split(key, 8)

    # 1) Module-typical small shape (single-block fast path).
    B, C, H, W = 2, 4, 16, 16
    z = jax.random.normal(kz, (B, C, H, W), dtype=jnp.float32)
    sldj = jax.random.normal(ks, (B,), dtype=jnp.float32) * 10.0
    nll = jax.block_until_ready(real_nvp_loss(z, sldj, k=256))
    ref = jax.block_until_ready(real_nvp_loss_ref(z, sldj, k=256))
    assert np.allclose(np.asarray(nll), np.asarray(ref), rtol=1e-5, atol=1e-4), (
        f"single-block: kernel={float(nll)} ref={float(ref)}")

    # 2) Tiled accumulator path (tiny budget forces TD=256 over D=1024).
    z2 = jax.random.normal(kz2, (8, 4, 16, 16), dtype=jnp.float32)
    sldj2 = jax.random.normal(ks2, (8,), dtype=jnp.float32) * 10.0
    nll2 = jax.block_until_ready(real_nvp_loss(z2, sldj2, k=256,
                                               block_budget_bytes=8 * 1024))
    ref2 = jax.block_until_ready(real_nvp_loss_ref(z2, sldj2, k=256))
    assert np.allclose(np.asarray(nll2), np.asarray(ref2), rtol=1e-4, atol=1e-2), (
        f"tiled: kernel={float(nll2)} ref={float(ref2)}")

    # 3) Ragged feature tail (D=300, TD forced to 128 -> 3 tiles, masked tail).
    z3 = jax.random.normal(kz3, (2, 3, 10, 10), dtype=jnp.float32)
    sldj3 = jax.random.normal(ks3, (2,), dtype=jnp.float32) * 10.0
    nll3 = jax.block_until_ready(real_nvp_loss(z3, sldj3, k=256,
                                               block_budget_bytes=1024))
    ref3 = jax.block_until_ready(real_nvp_loss_ref(z3, sldj3, k=256))
    assert np.allclose(np.asarray(nll3), np.asarray(ref3), rtol=1e-4, atol=1e-2), (
        f"ragged: kernel={float(nll3)} ref={float(ref3)}")

    # 4) Native bf16 streaming (cast to f32 happens in-kernel).
    z4 = jax.random.normal(kz4, (2, 4, 16, 16), dtype=jnp.bfloat16)
    sldj4 = jax.random.normal(ks4, (2,), dtype=jnp.float32) * 10.0
    nll4 = jax.block_until_ready(real_nvp_loss(z4, sldj4, k=256))
    ref4 = jax.block_until_ready(real_nvp_loss_ref(z4, sldj4, k=256))
    assert np.allclose(np.asarray(nll4), np.asarray(ref4), rtol=1e-4, atol=1e-2), (
        f"bf16: kernel={float(nll4)} ref={float(ref4)}")

    print("KERNEL_OK")
</pallas_src>

<mosaic_0001>
module attributes {stable_mosaic.version = 11 : i64} {
  func.func @_sum_sq_single_kernel(%arg0: i32, %arg1: memref<2x1024xf32, #tpu.memory_space<vmem>>, %arg2: memref<2x1xf32, #tpu.memory_space<vmem>>) attributes {dimension_semantics = [#tpu.dimension_semantics<parallel>], iteration_bounds = array<i64: 1>, scalar_prefetch = 0 : i64, scratch_operands = 0 : i64, tpu.core_type = #tpu.core_type<tc>, window_params = [{transform_indices = @transform_0, window_bounds = array<i64: 2, 1024>}, {transform_indices = @transform_1, window_bounds = array<i64: 2, 1>}]} {
    %c0 = arith.constant 0 : index
    %c0_0 = arith.constant 0 : index
    %0 = vector.load %arg1[%c0, %c0_0] : memref<2x1024xf32, #tpu.memory_space<vmem>>, vector<2x1024xf32>
    %1 = arith.mulf %0, %0 : vector<2x1024xf32>
    %cst = arith.constant dense<0.000000e+00> : vector<2xf32>
    %2 = vector.multi_reduction <add>, %1, %cst [1] : vector<2x1024xf32> to vector<2xf32>
    %3 = vector.shape_cast %2 : vector<2xf32> to vector<2x1xf32>
    %c0_1 = arith.constant 0 : index
    %c0_2 = arith.constant 0 : index
    %4 = vector.load %arg2[%c0_1, %c0_2] : memref<2x1xf32, #tpu.memory_space<vmem>>, vector<2x1xf32>
    tpu.vector_store %arg2[%c0_1, %c0_2], %3 {strides = array<i32>} : memref<2x1xf32, #tpu.memory_space<vmem>>, vector<2x1xf32>,
    return
  }
  func.func @transform_0(%arg0: i32) -> (i32, i32) {
    %c0_i32 = arith.constant 0 : i32
    %c0_i32_0 = arith.constant 0 : i32
    return %arg0, %c0_i32 : i32, i32
  }
  func.func @transform_1(%arg0: i32) -> (i32, i32) {
    %c0_i32 = arith.constant 0 : i32
    %c0_i32_0 = arith.constant 0 : i32
    return %arg0, %c0_i32 : i32, i32
  }
}

</mosaic_0001>

<llo_original>
// kernel: tpu_custom_call.1
$region0: #{tpu_custom_call.1}
  #allocation0 [shape = 'u32[]', space=smem, size = 0x4, offset = 0x4, fixed_abs, tag = 'smem constant byte address 0x4 - core index']
  #allocation1 [shape = 'u32[72,128]{1,0:T(1,128)}', space=vmem, size = 0x9000, scoped, tag = 'internal scratch']
  %s0 = inlined_call_operand.hbm [shape: f32[2,1024], index: 0, kind: input, shape index: {}]
  %s1 = inlined_call_operand.vmem [shape: f32[2,1], index: 1, kind: output, shape index: {}]
  %s2 = sld [smem:[#allocation0]]
  $region18: #{tpu_custom_call.1} parent=0
    _
  %s4 = ssub.s32 1, %s2
  %s5 = scalar_select 0, %s4, %s2
  $region1: #{tpu_custom_call.1} parent=0
    #allocation2 [shape = 'u8[8192]{0}', space=vmem, size = 0x2000, scoped, tag = 'input window, operand 0, single buffered']
    #allocation3 [shape = 's32[1]{0}', space=sflag, size = 0x4, scoped, tag = 'scoped memory for tpu_custom_call.1']
    %6 = vsyncpa [#allocation3], 0
    // Predicated region
    $region2: #{tpu_custom_call.1} parent=1 // pred_check
      _
    $region3: #{tpu_custom_call.1} parent=1 // pred_check_branch
      %8 = sbr.rel (0) target = $region5
    $region4: #{tpu_custom_call.1} parent=1 // pred_region
      %10 = vsyncadd [#allocation3], 0
      %s12 = sshll.u32 %s0, 4
      %s13 = int_to_ptr.hbm [resolvable:$true] %s12
      %s14 = sshll.u32 [#allocation2], 4
      %s15 = int_to_ptr.vmem [resolvable:$true] %s14
      %17 = dma.hbm_to_vmem [thread:$0]  %s13, 256, %s15, [#allocation3]
    $region5: #{tpu_custom_call.1} parent=1 // pred_fallthru
      _
    // Predicated region
    $region6: #{tpu_custom_call.1} parent=1 // pred_check
      _
    $region7: #{tpu_custom_call.1} parent=1 // pred_check_branch
      %19 = sbr.rel (0) target = $region9
    $region8: #{tpu_custom_call.1} parent=1 // pred_region
      %21 = dma.done [#allocation3], 256
    $region9: #{tpu_custom_call.1} parent=1 // pred_fallthru
      _
    %v22 = vld [vmem:[#allocation2] sm:$0xff]
    %v23 = vld [vmem:[#allocation2 + $0x8] sm:$0xff]
    %v24 = vmul.f32 %v22, %v22
    %v25 = vmul.f32 %v23, %v23
    %28 = vst [vmem:[#allocation1] ss:$4 sm:$0xff] %v24
    %s29 = scalar_lea.vmem [#allocation1], 32
    %30 = vst [vmem:[%s29] ss:$4 sm:$0xff] %v25
    %v31 = vld.sshfl [vmem:[#allocation1] sm:$0xff pattern:$0x73625140]
    %v32 = vld.sshfl [vmem:[#allocation1 + $0x8] sm:$0xff pattern:$0x73625140]
    %v33 = vld.sshfl [vmem:[#allocation1 + $0x10] sm:$0xff pattern:$0x73625140]
    %v34 = vld.sshfl [vmem:[#allocation1 + $0x18] sm:$0xff pattern:$0x73625140]
    %v35 = vld.sshfl [vmem:[#allocation1 + $0x20] sm:$0xff pattern:$0x73625140]
    %v36 = vld.sshfl [vmem:[#allocation1 + $0x28] sm:$0xff pattern:$0x73625140]
    %v37 = vld.sshfl [vmem:[#allocation1 + $0x30] sm:$0xff pattern:$0x73625140]
    %v38 = vld.sshfl [vmem:[#allocation1 + $0x38] sm:$0xff pattern:$0x73625140]
    %vm47 = vcmask 1041408
    %v48 = vsel %vm47, %v31, 0.0
    %v49 = vsel %vm47, %v32, 0.0
    %v50 = vadd.f32 %v48, %v49
    %v51 = vsel %vm47, %v33, 0.0
    %v52 = vadd.f32 %v50, %v51
    %v53 = vsel %vm47, %v34, 0.0
    %v54 = vadd.f32 %v52, %v53
    %v55 = vsel %vm47, %v35, 0.0
    %v56 = vadd.f32 %v54, %v55
    %v57 = vsel %vm47, %v36, 0.0
    %v58 = vadd.f32 %v56, %v57
    %v59 = vsel %vm47, %v37, 0.0
    %v60 = vadd.f32 %v58, %v59
    %v61 = vsel %vm47, %v38, 0.0
    %v62 = vadd.f32 %v60, %v61
    %63 = vadd.xlane.f32.xlu0 %v62
    %v64 = vpop.xlane.xlu0 %63
    %vm65 = vcmask 1024
    %66 = vst.msk [vmem:[%s1] sm:$0x3] %vm65, %v64
    // Predicated region
    $region10: #{tpu_custom_call.1} parent=1 // pred_check
      _
    $region11: #{tpu_custom_call.1} parent=1 // pred_check_branch
      %68 = sbr.rel (0) target = $region13
    $region12: #{tpu_custom_call.1} parent=1 // pred_region
      _
    $region13: #{tpu_custom_call.1} parent=1 // pred_fallthru
      _
    // Predicated region
    $region14: #{tpu_custom_call.1} parent=1 // pred_check
      _
    $region15: #{tpu_custom_call.1} parent=1 // pred_check_branch
      %70 = sbr.rel (0) target = $region17
    $region16: #{tpu_custom_call.1} parent=1 // pred_region
      _
    $region17: #{tpu_custom_call.1} parent=1 // pred_fallthru
      _
    %71 = vsyncpa [#allocation3], 1

</llo_original>
